<compile_context>
chip_gen: v7x
topology: tpu7x:2x2x1
jax: 0.10.0
libtpu: 0.0.40
codegen_flags: <defaults>
</compile_context>

<pallas_src>
import functools

import jax
import jax.numpy as jnp
from jax import lax
from jax.experimental import pallas as pl
from jax.experimental.pallas import tpu as pltpu

LANES = 128
MAX_TILE_ROWS = 4096        # up to 4096 x 128 f32 = 2 MiB per input block
MIN_PALLAS_ELEMS = 1 << 18  # below this a fused jnp reduction wins


def _cdiv(a, b):
    return -(-a // b)


def _sublane_multiple(dtype):
    # minimal second-to-last block granularity: f32 -> 8, bf16 -> 16, int8 -> 32
    itemsize = jnp.dtype(dtype).itemsize
    return max(8, 8 * (4 // max(itemsize, 1)))


def _default_num_partials():
    # 2 TensorCores per chip on v7x (and megacore v4/v5p); 1 TC on v5e/v6e.
    try:
        kind = (jax.devices()[0].device_kind or "").lower()
    except Exception:
        return 2
    if any(s in kind for s in ("v5e", "v5 lite", "v5lite", "v6e", "v6 lite", "v6lite")):
        return 1
    return 2


def _dice_partials_kernel(x_ref, y_ref, part_ref, acc_xy, acc_sum, *, slab):
    """Accumulate per-lane partials of sum(x*y) and sum(x+y) for one stream partial."""
    i = pl.program_id(1)

    @pl.when(i == 0)
    def _init():
        acc_xy[...] = jnp.zeros_like(acc_xy)
        acc_sum[...] = jnp.zeros_like(acc_sum)

    tile_rows = x_ref.shape[0]          # static
    n_slabs = tile_rows // slab         # static

    def body(s, carry):
        r = pl.multiple_of(s * slab, slab)
        xs = x_ref[pl.ds(r, slab), :].astype(jnp.float32)
        ys = y_ref[pl.ds(r, slab), :].astype(jnp.float32)
        prod = xs * ys
        ssum = xs + ys
        if slab > 8:  # narrow-dtype slabs: fold down to one (8, 128) vreg
            prod = jnp.sum(prod.reshape(-1, 8, LANES), axis=0)
            ssum = jnp.sum(ssum.reshape(-1, 8, LANES), axis=0)
        acc_xy[...] += prod
        acc_sum[...] += ssum
        return carry

    lax.fori_loop(0, n_slabs, body, 0, unroll=max(1, min(8, n_slabs)))

    @pl.when(i == pl.num_programs(1) - 1)
    def _finalize():
        part_ref[0, 0:8, :] = acc_xy[...]
        part_ref[0, 8:16, :] = acc_sum[...]


def _dice_jnp(x, y, smooth):
    xf = x.astype(jnp.float32)
    yf = y.astype(jnp.float32)
    inter = jnp.sum(xf * yf)
    dice = (2.0 * inter + smooth) / (jnp.sum(xf) + jnp.sum(yf) + smooth)
    return 1.0 - dice


def dice_loss(inputs, targets, smooth=1.0, *,
              min_pallas_elems=MIN_PALLAS_ELEMS, num_partials=None):
    """Pallas TPU implementation of DiceLoss.forward."""
    x = inputs.reshape(-1)   # native dtype; f32 cast happens in-kernel
    y = targets.reshape(-1)
    n = x.shape[0]

    # Tiny inputs: the fused jnp reduction beats a kernel launch + partial combine.
    if n < min_pallas_elems:
        return _dice_jnp(x, y, smooth)

    gran = max(_sublane_multiple(x.dtype), _sublane_multiple(y.dtype))
    rows = n // LANES
    if rows < gran:
        return _dice_jnp(x, y, smooth)

    if num_partials is None:
        num_partials = _default_num_partials()
    num_partials = max(1, min(num_partials, rows // gran))

    # Tile plan: near-even tiles (multiple of `gran`, <= MAX_TILE_ROWS) that
    # cover as much of the stream as possible; the small remainder (`tail`)
    # is reduced with plain jnp in the wrapper (no jnp.pad full-copy pass).
    per_part = rows // num_partials
    est_steps = _cdiv(per_part, MAX_TILE_ROWS)
    tile_rows = max(gran, ((per_part // est_steps) // gran) * gran)
    steps_per_part = per_part // tile_rows
    covered_rows = num_partials * steps_per_part * tile_rows
    covered = covered_rows * LANES
    tail = n - covered

    xk = x if tail == 0 else lax.slice(x, (0,), (covered,))
    yk = y if tail == 0 else lax.slice(y, (0,), (covered,))
    x2 = xk.reshape(covered_rows, LANES)
    y2 = yk.reshape(covered_rows, LANES)

    def in_map(p, i):
        return (p * steps_per_part + i, 0)

    # Double-buffered input footprint + headroom; >= 32 MiB is safe on all gens
    # (v5e/v6e physical VMEM 128 MiB, v7x 64 MiB per TC).
    block_bytes = tile_rows * LANES * (jnp.dtype(x.dtype).itemsize
                                       + jnp.dtype(y.dtype).itemsize)
    vmem_limit = int(max(32 << 20, min(96 << 20, 2 * block_bytes + (8 << 20))))

    cost = pl.CostEstimate(
        flops=3 * covered,
        transcendentals=0,
        bytes_accessed=int(x2.nbytes) + int(y2.nbytes) + num_partials * 16 * LANES * 4,
    )

    kernel = functools.partial(_dice_partials_kernel, slab=gran)

    parts = pl.pallas_call(
        kernel,
        out_shape=jax.ShapeDtypeStruct((num_partials, 16, LANES), jnp.float32),
        grid_spec=pltpu.PrefetchScalarGridSpec(
            num_scalar_prefetch=0,
            grid=(num_partials, steps_per_part),
            in_specs=[
                pl.BlockSpec((tile_rows, LANES), in_map),
                pl.BlockSpec((tile_rows, LANES), in_map),
            ],
            out_specs=pl.BlockSpec((1, 16, LANES), lambda p, i: (p, 0, 0)),
            scratch_shapes=[
                pltpu.VMEM((8, LANES), jnp.float32),   # per-lane sum(x*y) partial
                pltpu.VMEM((8, LANES), jnp.float32),   # per-lane sum(x+y) partial
            ],
        ),
        compiler_params=pltpu.CompilerParams(
            # NOTE: on v7x, if plain "parallel" does not shard axis 0 across the
            # two TensorCores, switch it to pltpu.CORE_PARALLEL.
            dimension_semantics=("parallel", "arbitrary"),
            vmem_limit_bytes=vmem_limit,
        ),
        cost_estimate=cost,
    )(x2, y2)

    intersection = jnp.sum(parts[:, 0:8, :])
    total = jnp.sum(parts[:, 8:16, :])

    if tail:
        xt = lax.slice(x, (covered,), (n,)).astype(jnp.float32)
        yt = lax.slice(y, (covered,), (n,)).astype(jnp.float32)
        intersection = intersection + jnp.sum(xt * yt)
        total = total + jnp.sum(xt) + jnp.sum(yt)

    dice = (2.0 * intersection + smooth) / (total + smooth)
    return 1.0 - dice


if __name__ == "__main__":
    key = jax.random.PRNGKey(0)
    k1, k2, k3, k4 = jax.random.split(key, 4)

    def ref_loss(inp, tgt, smooth=1.0):
        xf = inp.reshape(-1).astype(jnp.float32)
        yf = tgt.reshape(-1).astype(jnp.float32)
        inter = jnp.sum(xf * yf)
        return 1.0 - (2.0 * inter + smooth) / (jnp.sum(xf) + jnp.sum(yf) + smooth)

    # 1) NCHW segmentation-style prediction / mask: batch=2, channels=4, 16x16.
    #    Force the Pallas path (the auto path would short-circuit to jnp for
    #    something this small) so the kernel is actually exercised.
    inputs = jax.nn.sigmoid(jax.random.normal(k1, (2, 4, 16, 16), dtype=jnp.float32))
    targets = (jax.random.uniform(k2, (2, 4, 16, 16)) > 0.5).astype(jnp.float32)

    loss_kernel = jax.block_until_ready(
        dice_loss(inputs, targets, smooth=1.0, min_pallas_elems=0))
    loss_auto = jax.block_until_ready(dice_loss(inputs, targets, smooth=1.0))
    ref = ref_loss(inputs, targets)
    assert jnp.allclose(loss_kernel, ref, rtol=1e-4, atol=1e-5), (loss_kernel, ref)
    assert jnp.allclose(loss_auto, ref, rtol=1e-4, atol=1e-5), (loss_auto, ref)

    # 2) Non-lane-aligned shape: exercises the kernel-prefix + jnp-tail path
    #    (replaces the old jnp.pad full-copy path).
    inputs2 = jax.nn.sigmoid(jax.random.normal(k3, (3, 5, 17, 13), dtype=jnp.float32))
    targets2 = (jax.random.uniform(k4, (3, 5, 17, 13)) > 0.5).astype(jnp.float32)
    loss2 = jax.block_until_ready(
        dice_loss(inputs2, targets2, smooth=1.0, min_pallas_elems=0))
    ref2 = ref_loss(inputs2, targets2)
    assert jnp.allclose(loss2, ref2, rtol=1e-4, atol=1e-5), (loss2, ref2)

    print("KERNEL_OK")
</pallas_src>

<mosaic_0001>
module attributes {stable_mosaic.version = 11 : i64} {
  func.func @_dice_partials_kernel(%arg0: i32, %arg1: i32, %arg2: memref<8x128xf32, #tpu.memory_space<vmem>>, %arg3: memref<8x128xf32, #tpu.memory_space<vmem>>, %arg4: memref<1x16x128xf32, #tpu.memory_space<vmem>>, %arg5: memref<8x128xf32, #tpu.memory_space<vmem>>, %arg6: memref<8x128xf32, #tpu.memory_space<vmem>>) attributes {dimension_semantics = [#tpu.dimension_semantics<parallel>, #tpu.dimension_semantics<arbitrary>], iteration_bounds = array<i64: 2, 1>, scalar_prefetch = 0 : i64, scratch_operands = 2 : i64, tpu.core_type = #tpu.core_type<tc>, window_params = [{transform_indices = @transform_0, window_bounds = array<i64: 8, 128>}, {transform_indices = @transform_1, window_bounds = array<i64: 8, 128>}, {transform_indices = @transform_2, window_bounds = array<i64: 1, 16, 128>}]} {
    %c0_i32 = arith.constant 0 : i32
    %0 = arith.cmpi eq, %arg1, %c0_i32 : i32
    %1 = arith.extui %0 : i1 to i32
    %c0_i32_0 = arith.constant 0 : i32
    %2 = arith.cmpi ne, %1, %c0_i32_0 : i32
    scf.if %2 {
      %cst = arith.constant 0.000000e+00 : f32
      %20 = vector.broadcast %cst : f32 to vector<8x128xf32>
      %c0_13 = arith.constant 0 : index
      %c0_14 = arith.constant 0 : index
      %21 = vector.load %arg5[%c0_13, %c0_14] : memref<8x128xf32, #tpu.memory_space<vmem>>, vector<8x128xf32>
      tpu.vector_store %arg5[%c0_13, %c0_14], %20 {strides = array<i32>} : memref<8x128xf32, #tpu.memory_space<vmem>>, vector<8x128xf32>,
      %cst_15 = arith.constant 0.000000e+00 : f32
      %22 = vector.broadcast %cst_15 : f32 to vector<8x128xf32>
      %c0_16 = arith.constant 0 : index
      %c0_17 = arith.constant 0 : index
      %23 = vector.load %arg6[%c0_16, %c0_17] : memref<8x128xf32, #tpu.memory_space<vmem>>, vector<8x128xf32>
      tpu.vector_store %arg6[%c0_16, %c0_17], %22 {strides = array<i32>} : memref<8x128xf32, #tpu.memory_space<vmem>>, vector<8x128xf32>,
    } else {
    }
    %c0_i32_1 = arith.constant 0 : i32
    %c8_i32 = arith.constant 8 : i32
    %3 = arith.muli %c0_i32_1, %c8_i32 : i32
    %4 = tpu.assume_multiple %3, 8 : i32
    %5 = arith.index_cast %4 : i32 to index
    %c0 = arith.constant 0 : index
    %6 = vector.load %arg2[%5, %c0] : memref<8x128xf32, #tpu.memory_space<vmem>>, vector<8x128xf32>
    %7 = arith.index_cast %4 : i32 to index
    %c0_2 = arith.constant 0 : index
    %8 = vector.load %arg3[%7, %c0_2] : memref<8x128xf32, #tpu.memory_space<vmem>>, vector<8x128xf32>
    %9 = arith.mulf %6, %8 : vector<8x128xf32>
    %10 = arith.addf %6, %8 : vector<8x128xf32>
    %c0_3 = arith.constant 0 : index
    %c0_4 = arith.constant 0 : index
    %11 = vector.load %arg5[%c0_3, %c0_4] : memref<8x128xf32, #tpu.memory_space<vmem>>, vector<8x128xf32>
    %12 = arith.addf %11, %9 : vector<8x128xf32>
    %c0_5 = arith.constant 0 : index
    %c0_6 = arith.constant 0 : index
    %13 = vector.load %arg5[%c0_5, %c0_6] : memref<8x128xf32, #tpu.memory_space<vmem>>, vector<8x128xf32>
    tpu.vector_store %arg5[%c0_5, %c0_6], %12 {strides = array<i32>} : memref<8x128xf32, #tpu.memory_space<vmem>>, vector<8x128xf32>,
    %c0_7 = arith.constant 0 : index
    %c0_8 = arith.constant 0 : index
    %14 = vector.load %arg6[%c0_7, %c0_8] : memref<8x128xf32, #tpu.memory_space<vmem>>, vector<8x128xf32>
    %15 = arith.addf %14, %10 : vector<8x128xf32>
    %c0_9 = arith.constant 0 : index
    %c0_10 = arith.constant 0 : index
    %16 = vector.load %arg6[%c0_9, %c0_10] : memref<8x128xf32, #tpu.memory_space<vmem>>, vector<8x128xf32>
    tpu.vector_store %arg6[%c0_9, %c0_10], %15 {strides = array<i32>} : memref<8x128xf32, #tpu.memory_space<vmem>>, vector<8x128xf32>,
    %c1_i32 = arith.constant 1 : i32
    %c0_i32_11 = arith.constant 0 : i32
    %17 = arith.cmpi eq, %arg1, %c0_i32_11 : i32
    %18 = arith.extui %17 : i1 to i32
    %c0_i32_12 = arith.constant 0 : i32
    %19 = arith.cmpi ne, %18, %c0_i32_12 : i32
    scf.if %19 {
      %c0_13 = arith.constant 0 : index
      %c0_14 = arith.constant 0 : index
      %20 = vector.load %arg5[%c0_13, %c0_14] : memref<8x128xf32, #tpu.memory_space<vmem>>, vector<8x128xf32>
      %c0_15 = arith.constant 0 : index
      %c0_16 = arith.constant 0 : index
      %c0_17 = arith.constant 0 : index
      %21 = vector.load %arg4[%c0_15, %c0_16, %c0_17] : memref<1x16x128xf32, #tpu.memory_space<vmem>>, vector<1x8x128xf32>
      %22 = vector.shape_cast %21 : vector<1x8x128xf32> to vector<8x128xf32>
      %23 = vector.shape_cast %20 : vector<8x128xf32> to vector<1x8x128xf32>
      tpu.vector_store %arg4[%c0_15, %c0_16, %c0_17], %23 {strides = array<i32>} : memref<1x16x128xf32, #tpu.memory_space<vmem>>, vector<1x8x128xf32>,
      %c0_18 = arith.constant 0 : index
      %c0_19 = arith.constant 0 : index
      %24 = vector.load %arg6[%c0_18, %c0_19] : memref<8x128xf32, #tpu.memory_space<vmem>>, vector<8x128xf32>
      %c0_20 = arith.constant 0 : index
      %c8 = arith.constant 8 : index
      %c0_21 = arith.constant 0 : index
      %25 = vector.load %arg4[%c0_20, %c8, %c0_21] : memref<1x16x128xf32, #tpu.memory_space<vmem>>, vector<1x8x128xf32>
      %26 = vector.shape_cast %25 : vector<1x8x128xf32> to vector<8x128xf32>
      %27 = vector.shape_cast %24 : vector<8x128xf32> to vector<1x8x128xf32>
      tpu.vector_store %arg4[%c0_20, %c8, %c0_21], %27 {strides = array<i32>} : memref<1x16x128xf32, #tpu.memory_space<vmem>>, vector<1x8x128xf32>,
    } else {
    }
    return
  }
  func.func @transform_0(%arg0: i32, %arg1: i32) -> (i32, i32) {
    %c1_i32 = arith.constant 1 : i32
    %0 = arith.muli %arg0, %c1_i32 : i32
    %1 = arith.addi %0, %arg1 : i32
    %c0_i32 = arith.constant 0 : i32
    %c0_i32_0 = arith.constant 0 : i32
    return %1, %c0_i32 : i32, i32
  }
  func.func @transform_1(%arg0: i32, %arg1: i32) -> (i32, i32) {
    %c1_i32 = arith.constant 1 : i32
    %0 = arith.muli %arg0, %c1_i32 : i32
    %1 = arith.addi %0, %arg1 : i32
    %c0_i32 = arith.constant 0 : i32
    %c0_i32_0 = arith.constant 0 : i32
    return %1, %c0_i32 : i32, i32
  }
  func.func @transform_2(%arg0: i32, %arg1: i32) -> (i32, i32, i32) {
    %c0_i32 = arith.constant 0 : i32
    %c0_i32_0 = arith.constant 0 : i32
    %c0_i32_1 = arith.constant 0 : i32
    return %arg0, %c0_i32, %c0_i32_0 : i32, i32, i32
  }
}

</mosaic_0001>

<llo_original>
// kernel: tpu_custom_call.1
$region0: #{tpu_custom_call.1}
  #allocation0 [shape = 'u32[]', space=smem, size = 0x4, offset = 0x4, fixed_abs, tag = 'smem constant byte address 0x4 - core index']
  #allocation1 [shape = 'u32[144,128]{1,0:T(1,128)}', space=vmem, size = 0x12000, scoped, tag = 'internal scratch']
  #allocation2 [shape = 'f32[8,128]{1,0:T(8,128)}', space=vmem, size = 0x1000, scoped, tag = 'scratch operand']
  #allocation3 [shape = 'f32[8,128]{1,0:T(8,128)}', space=vmem, size = 0x1000, scoped, tag = 'scratch operand']
  %s0 = inlined_call_operand.hbm [shape: f32[16,128], index: 0, kind: input, shape index: {}]
  %s1 = inlined_call_operand.hbm [shape: f32[16,128], index: 1, kind: input, shape index: {}]
  %s2 = inlined_call_operand.hbm [shape: f32[2,16,128], index: 2, kind: output, shape index: {}]
  %s3 = sld [smem:[#allocation0]]
  $region57: #{tpu_custom_call.1} parent=0
    _
  %s5 = ssub.s32 1, %s3
  %s6 = scalar_select 0, %s5, %s3
  $region1: #{tpu_custom_call.1} parent=0
    #allocation4 [shape = 'u8[8192]{0}', space=vmem, size = 0x2000, scoped, tag = 'input window, operand 0']
    #allocation5 [shape = 's32[2]{0}', space=sflag, size = 0x8, scoped, tag = 'scoped memory for tpu_custom_call.1']
    #allocation6 [shape = 's32[2]{0}', space=sflag, size = 0x8, scoped, tag = 'scoped memory for tpu_custom_call.1']
    #allocation7 [shape = 'u8[8192]{0}', space=vmem, size = 0x2000, scoped, tag = 'input window, operand 1']
    #allocation8 [shape = 's32[2]{0}', space=sflag, size = 0x8, scoped, tag = 'scoped memory for tpu_custom_call.1']
    #allocation9 [shape = 'u8[16384]{0}', space=vmem, size = 0x4000, scoped, tag = 'output window, operand 0']
    %7 = vsyncpa [#allocation5], 0
    %s8 = scalar_lea.sflag [#allocation5], 1
    %9 = vsyncpa %s8, 0
    %10 = vsyncpa [#allocation8], 0
    %s11 = scalar_lea.sflag [#allocation8], 1
    %12 = vsyncpa %s11, 0
    %13 = vsyncpa [#allocation6], 0
    %s14 = scalar_lea.sflag [#allocation6], 1
    %15 = vsyncpa %s14, 0
    loop: start=0, step=1, limit=4
    $region2: #{tpu_custom_call.1} parent=1 // loop_pre_header
      _
    $region3: #{tpu_custom_call.1} parent=1 // loop_header
      %s17 = sphi 0, %s21
      %p18 = scmp.ge.s32.totalorder %s17, 4
      %s24 = sphi 0, %s36
      %s25 = sphi 0, %s32
      %s26 = sphi 0, %s24
      %s27 = sphi 0, %s25
      %s28 = sphi 0, %s26
      %s29 = sphi 0, %s27
      %s41 = sphi 0, %s43
      %s44 = sphi 0, %s41
      %s45 = sphi 0, %s44
      %s61 = sphi 0, %s45
      %s69 = sphi 0, %s71
      %s72 = sphi 0, %s69
      %s73 = sphi 0, %s72
      %s89 = sphi 0, %s73
      %s95 = sphi 0, %s97
      %s98 = sphi 0, %s95
      %s99 = sphi 0, %s98
      %s115 = sphi 0, %s99
    $region4: #{tpu_custom_call.1} parent=1 // loop_header_branch
      %20 = sbr.rel (%p18) target = $region8
    $region5: #{tpu_custom_call.1} parent=1 // loop_body
      %s22 = ssub.s32 %s17, 1
      %s23 = ssub.s32 %s17, 2
      %s30 = sadd.s32 1, %s25
      %p31 = scmp.ge.s32.totalorder %s30, 1
      %s32 = scalar_select %p31, 0, %s30
      %s33 = sadd.s32 1, %s24
      %s34 = scalar_select %p31, %s33, %s24
      %p35 = scmp.ge.s32.totalorder %s34, 2
      %s36 = scalar_select %p35, 0, %s34
      %s37 = sadd.s32 %s24, %s25
      %s38 = sadd.s32 %s36, %s32
      %s39 = ssub.s32 %s37, %s38
      %p40 = scmp.eq.s32.totalorder %s39, 0
      %s42 = sadd.s32 %s41, 1
      %s43 = scalar_select %p40, %s41, %s42
      %p46 = pneg %p40
      %p47 = scmp.eq.s32.totalorder %s17, 1
      %p48 = por %p46, %p47
      %p49 = scmp.ne.s32.totalorder %s41, %s44
      %p50 = scmp.eq.s32.totalorder %s17, 0
      %p51 = por %p49, %p50
      %p52 = scmp.ne.s32.totalorder %s41, %s44
      %p53 = scmp.eq.s32.totalorder %s22, 1
      %p54 = por %p52, %p53
      %p55 = scmp.ne.s32.totalorder %s44, %s45
      %p56 = scmp.eq.s32.totalorder %s22, 0
      %p57 = por %p55, %p56
      %p58 = scmp.ne.s32.totalorder %s44, %s45
      %p59 = scmp.eq.s32.totalorder %s23, 1
      %p60 = por %p58, %p59
      %p62 = scmp.ne.s32.totalorder %s45, %s61
      %p63 = scmp.eq.s32.totalorder %s23, 0
      %p64 = por %p62, %p63
      %s65 = sadd.s32 %s24, %s25
      %s66 = sadd.s32 %s36, %s32
      %s67 = ssub.s32 %s65, %s66
      %p68 = scmp.eq.s32.totalorder %s67, 0
      %s70 = sadd.s32 %s69, 1
      %s71 = scalar_select %p68, %s69, %s70
      %p74 = pneg %p68
      %p75 = scmp.eq.s32.totalorder %s17, 1
      %p76 = por %p74, %p75
      %p77 = scmp.ne.s32.totalorder %s69, %s72
      %p78 = scmp.eq.s32.totalorder %s17, 0
      %p79 = por %p77, %p78
      %p80 = scmp.ne.s32.totalorder %s69, %s72
      %p81 = scmp.eq.s32.totalorder %s22, 1
      %p82 = por %p80, %p81
      %p83 = scmp.ne.s32.totalorder %s72, %s73
      %p84 = scmp.eq.s32.totalorder %s22, 0
      %p85 = por %p83, %p84
      %p86 = scmp.ne.s32.totalorder %s72, %s73
      %p87 = scmp.eq.s32.totalorder %s23, 1
      %p88 = por %p86, %p87
      %p90 = scmp.ne.s32.totalorder %s73, %s89
      %p91 = scmp.eq.s32.totalorder %s23, 0
      %p92 = por %p90, %p91
      %s93 = ssub.s32 %s24, %s36
      %p94 = scmp.eq.s32.totalorder %s93, 0
      %s96 = sadd.s32 %s95, 1
      %s97 = scalar_select %p94, %s95, %s96
      %p100 = pneg %p94
      %p101 = scmp.eq.s32.totalorder %s17, 1
      %p102 = por %p100, %p101
      %p103 = scmp.ne.s32.totalorder %s95, %s98
      %p104 = scmp.eq.s32.totalorder %s17, 0
      %p105 = por %p103, %p104
      %p106 = scmp.ne.s32.totalorder %s95, %s98
      %p107 = scmp.eq.s32.totalorder %s22, 1
      %p108 = por %p106, %p107
      %p109 = scmp.ne.s32.totalorder %s98, %s99
      %p110 = scmp.eq.s32.totalorder %s22, 0
      %p111 = por %p109, %p110
      %p112 = scmp.ne.s32.totalorder %s98, %s99
      %p113 = scmp.eq.s32.totalorder %s23, 1
      %p114 = por %p112, %p113
      %p116 = scmp.ne.s32.totalorder %s99, %s115
      %p117 = scmp.eq.s32.totalorder %s23, 0
      %p118 = por %p116, %p117
      %p119 = scmp.le.s32.totalorder 1, %s17
      %p120 = scmp.lt.s32.totalorder %s17, 3
      %p121 = pnand %p119, %p120
      %p122 = pneg %p121
      // Predicated region
      $region9: #{tpu_custom_call.1} parent=5 // pred_check
        _
      $region10: #{tpu_custom_call.1} parent=5 // pred_check_branch
        %124 = sbr.rel (%p121) target = $region12
      $region11: #{tpu_custom_call.1} parent=5 // pred_region
        %s125 = ssub.s32 %s17, 1
      $region12: #{tpu_custom_call.1} parent=5 // pred_fallthru
        _
      %p126 = scmp.lt.s32.totalorder %s17, 2
      // Predicated region
      $region13: #{tpu_custom_call.1} parent=5 // pred_check
        %p127 = pneg %p126
      $region14: #{tpu_custom_call.1} parent=5 // pred_check_branch
        %129 = sbr.rel (%p127) target = $region16
      $region15: #{tpu_custom_call.1} parent=5 // pred_region
        // Predicated region
        $region17: #{tpu_custom_call.1} parent=15 // pred_check
          %p130 = pneg %p51
        $region18: #{tpu_custom_call.1} parent=15 // pred_check_branch
          %132 = sbr.rel (%p130) target = $region20
        $region19: #{tpu_custom_call.1} parent=15 // pred_region
          %s133 = sand.u32 %s41, 1
          %s134 = scalar_lea.sflag [#allocation5], %s133
          %s135 = sand.u32 %s41, 1
          %s136 = smul.addr %s135, 8
          %s137 = scalar_lea.vmem [#allocation4], %s136
          %s138 = sadd.s32 %s24, %s25
          %s140 = ssub.s32 128, 128
          %141 = vsyncadd %s134, %s140
          %s142 = smul.addr %s138, 128
          %s143 = scalar_lea.hbm %s0, %s142
          %s145 = sshll.u32 %s137, 4
          %s146 = int_to_ptr.vmem [resolvable:$true] %s145
          %148 = dma.hbm_to_vmem [thread:$0]  %s143, 128, %s146, %s134
        $region20: #{tpu_custom_call.1} parent=15 // pred_fallthru
          _
        // Predicated region
        $region21: #{tpu_custom_call.1} parent=15 // pred_check
          %p149 = pneg %p79
        $region22: #{tpu_custom_call.1} parent=15 // pred_check_branch
          %151 = sbr.rel (%p149) target = $region24
        $region23: #{tpu_custom_call.1} parent=15 // pred_region
          %s152 = sand.u32 %s69, 1
          %s153 = scalar_lea.sflag [#allocation8], %s152
          %s154 = sand.u32 %s69, 1
          %s155 = smul.addr %s154, 8
          %s156 = scalar_lea.vmem [#allocation7], %s155
          %s157 = sadd.s32 %s24, %s25
          %s159 = ssub.s32 128, 128
          %160 = vsyncadd %s153, %s159
          %s161 = smul.addr %s157, 128
          %s162 = scalar_lea.hbm %s1, %s161
          %s164 = sshll.u32 %s156, 4
          %s165 = int_to_ptr.vmem [resolvable:$true] %s164
          %167 = dma.hbm_to_vmem [thread:$0]  %s162, 128, %s165, %s153
        $region24: #{tpu_custom_call.1} parent=15 // pred_fallthru
          _
      $region16: #{tpu_custom_call.1} parent=5 // pred_fallthru
        _
      %p168 = scmp.le.s32.totalorder 1, %s17
      %p169 = scmp.lt.s32.totalorder %s17, 3
      %p170 = pnand %p168, %p169
      %p171 = pneg %p170
      // Predicated region
      $region25: #{tpu_custom_call.1} parent=5 // pred_check
        _
      $region26: #{tpu_custom_call.1} parent=5 // pred_check_branch
        %173 = sbr.rel (%p170) target = $region28
      $region27: #{tpu_custom_call.1} parent=5 // pred_region
        %s174 = ssub.s32 %s17, 1
        %s175 = sand.u32 %s44, 1
        %s176 = scalar_lea.sflag [#allocation5], %s175
        %s177 = sand.u32 %s44, 1
        %s178 = smul.addr %s177, 8
        %s179 = scalar_lea.vmem [#allocation4], %s178
        // Predicated region
        $region29: #{tpu_custom_call.1} parent=27 // pred_check
          %p180 = pneg %p57
        $region30: #{tpu_custom_call.1} parent=27 // pred_check_branch
          %182 = sbr.rel (%p180) target = $region32
        $region31: #{tpu_custom_call.1} parent=27 // pred_region
          %183 = dma.done %s176, 128
        $region32: #{tpu_custom_call.1} parent=27 // pred_fallthru
          _
        %s184 = sand.u32 %s72, 1
        %s185 = scalar_lea.sflag [#allocation8], %s184
        %s186 = sand.u32 %s72, 1
        %s187 = smul.addr %s186, 8
        %s188 = scalar_lea.vmem [#allocation7], %s187
        // Predicated region
        $region33: #{tpu_custom_call.1} parent=27 // pred_check
          %p189 = pneg %p85
        $region34: #{tpu_custom_call.1} parent=27 // pred_check_branch
          %191 = sbr.rel (%p189) target = $region36
        $region35: #{tpu_custom_call.1} parent=27 // pred_region
          %192 = dma.done %s185, 128
        $region36: #{tpu_custom_call.1} parent=27 // pred_fallthru
          _
        %s193 = sand.u32 %s44, 1
        %s194 = scalar_lea.sflag [#allocation5], %s193
        %s195 = sand.u32 %s44, 1
        %s196 = smul.addr %s195, 8
        %s197 = scalar_lea.vmem [#allocation4], %s196
        %p198 = pneg %p57
        %p199 = pneg %p54
        %s200 = sand.u32 %s72, 1
        %s201 = scalar_lea.sflag [#allocation8], %s200
        %s202 = sand.u32 %s72, 1
        %s203 = smul.addr %s202, 8
        %s204 = scalar_lea.vmem [#allocation7], %s203
        %p205 = pneg %p85
        %p206 = pneg %p82
        %p207 = pneg %p111
        %p208 = pneg %p108
        %s209 = sand.u32 %s98, 1
        %s210 = scalar_lea.sflag [#allocation6], %s209
        %s211 = sand.u32 %s98, 1
        %s212 = smul.addr %s211, 16
        %s213 = scalar_lea.vmem [#allocation9], %s212
        %s214 = sadd.s32 %s26, %s27
        %s215 = sadd.s32 %s26, %s27
        %p216 = scmp.eq.s32.totalorder %s27, 0
        // Predicated region
        $region37: #{tpu_custom_call.1} parent=27 // pred_check
          %p217 = pneg %p216
        $region38: #{tpu_custom_call.1} parent=27 // pred_check_branch
          %219 = sbr.rel (%p217) target = $region40
        $region39: #{tpu_custom_call.1} parent=27 // pred_region
          %220 = vst [vmem:[#allocation2] sm:$0xff] 0.0
          %221 = vst [vmem:[#allocation3] sm:$0xff] 0.0
        $region40: #{tpu_custom_call.1} parent=27 // pred_fallthru
          _
        %v222 = vld [vmem:[%s179] sm:$0xff]
        %v223 = vld [vmem:[%s188] sm:$0xff]
        %v224 = vmul.f32 %v222, %v223
        %v225 = vadd.f32 %v222, %v223
        %v226 = vld [vmem:[#allocation2] sm:$0xff]
        %v227 = vadd.f32 %v226, %v224
        %228 = vst [vmem:[#allocation2] sm:$0xff] %v227
        %v229 = vld [vmem:[#allocation3] sm:$0xff]
        %v230 = vadd.f32 %v229, %v225
        %231 = vst [vmem:[#allocation3] sm:$0xff] %v230
        // Predicated region
        $region41: #{tpu_custom_call.1} parent=27 // pred_check
          %p232 = pneg %p216
        $region42: #{tpu_custom_call.1} parent=27 // pred_check_branch
          %234 = sbr.rel (%p232) target = $region44
        $region43: #{tpu_custom_call.1} parent=27 // pred_region
          %v235 = vld [vmem:[#allocation2] sm:$0xff]
          %236 = vst [vmem:[%s213] sm:$0xff] %v235
          %v237 = vld [vmem:[#allocation3] sm:$0xff]
          %238 = vst [vmem:[%s213 + $0x8] sm:$0xff] %v237
        $region44: #{tpu_custom_call.1} parent=27 // pred_fallthru
          _
        %s239 = sand.u32 %s98, 1
        %s240 = scalar_lea.sflag [#allocation6], %s239
        %s241 = sand.u32 %s98, 1
        %s242 = smul.addr %s241, 16
        %s243 = scalar_lea.vmem [#allocation9], %s242
        // Predicated region
        $region45: #{tpu_custom_call.1} parent=27 // pred_check
          %p244 = pneg %p108
        $region46: #{tpu_custom_call.1} parent=27 // pred_check_branch
          %246 = sbr.rel (%p244) target = $region48
        $region47: #{tpu_custom_call.1} parent=27 // pred_region
          %s248 = ssub.s32 256, 256
          %249 = vsyncadd %s240, %s248
          %s250 = smul.addr %s26, 2
          %s251 = smul.addr %s250, 128
          %s252 = scalar_lea.hbm %s2, %s251
          %s253 = sshll.u32 %s243, 4
          %s254 = int_to_ptr.vmem [resolvable:$true] %s253
          %259 = dma.vmem_to_hbm [thread:$0]  %s254, 256, %s252, %s240, 128, 128, 8
        $region48: #{tpu_custom_call.1} parent=27 // pred_fallthru
          _
      $region28: #{tpu_custom_call.1} parent=5 // pred_fallthru
        _
      %p260 = scmp.le.s32.totalorder 2, %s17
      // Predicated region
      $region49: #{tpu_custom_call.1} parent=5 // pred_check
        %p261 = pneg %p260
      $region50: #{tpu_custom_call.1} parent=5 // pred_check_branch
        %263 = sbr.rel (%p261) target = $region52
      $region51: #{tpu_custom_call.1} parent=5 // pred_region
        %s264 = ssub.s32 %s17, 2
        // Predicated region
        $region53: #{tpu_custom_call.1} parent=51 // pred_check
          %p265 = pneg %p114
        $region54: #{tpu_custom_call.1} parent=51 // pred_check_branch
          %267 = sbr.rel (%p265) target = $region56
        $region55: #{tpu_custom_call.1} parent=51 // pred_region
          %s268 = sand.u32 %s99, 1
          %s269 = scalar_lea.sflag [#allocation6], %s268
          %s270 = sand.u32 %s99, 1
          %s271 = smul.addr %s270, 16
          %s272 = scalar_lea.vmem [#allocation9], %s271
          %273 = dma.done %s269, 256
        $region56: #{tpu_custom_call.1} parent=51 // pred_fallthru
          _
      $region52: #{tpu_custom_call.1} parent=5 // pred_fallthru
        _
    $region6: #{tpu_custom_call.1} parent=1 // loop_footer
      %s21 = sadd.s32 1, %s17
    $region7: #{tpu_custom_call.1} parent=1 // loop_footer_branch
      %16 = sbr.rel target = $region3
    $region8: #{tpu_custom_call.1} parent=1 // loop_exit
      _
    %274 = vsyncpa [#allocation5], 1
    %s275 = scalar_lea.sflag [#allocation5], 1
    %276 = vsyncpa %s275, 1
    %277 = vsyncpa [#allocation8], 1
    %s278 = scalar_lea.sflag [#allocation8], 1
    %279 = vsyncpa %s278, 1
    %280 = vsyncpa [#allocation6], 1
    %s281 = scalar_lea.sflag [#allocation6], 1
    %282 = vsyncpa %s281, 1

</llo_original>
